<compile_context>
chip_gen: v6e
topology: v6e:2x2x1
jax: 0.10.0
libtpu: 0.0.40
codegen_flags: <defaults>
</compile_context>

<pallas_src>
import numpy as np
import jax
import jax.numpy as jnp
from jax.experimental import pallas as pl
from jax.experimental.pallas import tpu as pltpu

BN_EPS = 1e-5


def _round_up(v, m):
    return ((v + m - 1) // m) * m


# ----------------------------------------------------------------------------
# Fused kernel:
#   x_ref  : (Np, MT, JCp)  zero-padded raw re-sampled skeleton
#   wc_ref : (JCp, Hp)      backbone + BN + 1/(M*T) folded into fc1 (zero-padded)
#   bc_ref : (1,  Hp)       folded bias
#   w2_ref : (Hp, Kp)       fc2 (zero-padded)
#   b2_ref : (1,  Kp)
#   o_ref  : (Np, Kp)       lane/sublane-dense padded logits
# ----------------------------------------------------------------------------
def _fused_actionnet_kernel(x_ref, wc_ref, bc_ref, w2_ref, b2_ref, o_ref):
    # pooling over (M, T): plain sum, the 1/(M*T) scale is folded into wc
    pooled = jnp.sum(x_ref[...], axis=1)                                   # (Np, JCp)

    # fc1 with backbone / BatchNorm(eval) / pool-scale folded in, then ReLU
    h = jnp.dot(pooled, wc_ref[...],
                preferred_element_type=jnp.float32) + bc_ref[...]          # (Np, Hp)
    h = jnp.maximum(h, 0.0)                                                # dropout p=0

    # fc2 (padded to 128 output lanes -> unmasked stores)
    out = jnp.dot(h, w2_ref[...],
                  preferred_element_type=jnp.float32) + b2_ref[...]        # (Np, Kp)
    o_ref[...] = out.astype(o_ref.dtype)


def fused_forward(x3p, wc, bc, w2, b2):
    Np, _, _ = x3p.shape
    Kp = w2.shape[1]
    vmem = pl.BlockSpec(memory_space=pltpu.MemorySpace.VMEM)
    return pl.pallas_call(
        _fused_actionnet_kernel,
        out_shape=jax.ShapeDtypeStruct((Np, Kp), jnp.float32),
        in_specs=[vmem, vmem, vmem, vmem, vmem],
        out_specs=vmem,
    )(x3p, wc, bc, w2, b2)


# ----------------------------------------------------------------------------
# ActionNet wrapper (version='class')
# ----------------------------------------------------------------------------
class ActionNetPallas:
    def __init__(self, key, dim_rep=32, num_classes=16, hidden_dim=64,
                 num_joints=17, clip_len=8, in_chans=3):
        self.dim_rep = dim_rep
        self.num_classes = num_classes
        self.hidden_dim = hidden_dim
        self.feat_J = num_joints
        self.clip_len = clip_len
        self.in_chans = in_chans

        ks = jax.random.split(key, 10)
        f32 = jnp.float32
        J, C, R, H, K = num_joints, in_chans, dim_rep, hidden_dim, num_classes
        JC, JR = J * C, J * R

        # ---- raw (reference) parameters -------------------------------------
        # TODO(synk): the real DSTformer backbone is external to this module; it is
        # replaced here by a synthetic per-(frame,joint) linear get_representation.
        self.Wb = jax.random.normal(ks[0], (C, R), f32) * 0.1
        self.bb = jax.random.normal(ks[1], (1, R), f32) * 0.1
        self.W1 = jax.random.normal(ks[2], (JR, H), f32) * (1.0 / np.sqrt(JR))
        self.b1 = jax.random.normal(ks[3], (1, H), f32) * 0.01
        # BatchNorm1d(hidden_dim) affine params + running stats (eval mode)
        self.gamma = 1.0 + 0.1 * jax.random.normal(ks[4], (1, H), f32)
        self.beta = 0.1 * jax.random.normal(ks[5], (1, H), f32)
        self.rmean = 0.1 * jax.random.normal(ks[6], (1, H), f32)
        self.rvar = 1.0 + jnp.abs(jax.random.normal(ks[7], (1, H), f32)) * 0.1
        self.W2 = jax.random.normal(ks[8], (H, K), f32) * (1.0 / np.sqrt(H))
        self.b2 = jax.random.normal(ks[9], (1, K), f32) * 0.01

        # ---- folded / padded kernel parameters (built once at init) ---------
        JCp = _round_up(JC, 128)     # 51 -> 128
        Hp = _round_up(H, 128)       # 64 -> 128
        Kp = _round_up(K, 128)       # 16 -> 128
        self._JCp, self._Hp, self._Kp = JCp, Hp, Kp

        # fold eval-mode BN into fc1 (exact: running-stat BN is affine)
        scale = self.gamma * jax.lax.rsqrt(self.rvar + BN_EPS)             # (1, H)
        W1_fold = self.W1 * scale                                          # (JR, H)
        b1_fold = (self.b1 - self.rmean) * scale + self.beta               # (1, H)

        # block-diagonal backbone projection folded straight into fc1
        # TODO(synk): exact only for the linear backbone stand-in.
        W_block = jnp.kron(jnp.eye(J, dtype=f32), self.Wb)                 # (JC, JR)
        b_block = jnp.tile(self.bb, (1, J))                                # (1, JR)
        Wc_unit = W_block @ W1_fold                                        # (JC, H)
        bc_fold = b_block @ W1_fold + b1_fold                              # (1, H)

        self.Wc_unit = jnp.zeros((JCp, Hp), f32).at[:JC, :H].set(Wc_unit)  # unscaled
        self.bc = jnp.zeros((1, Hp), f32).at[:, :H].set(bc_fold)
        self.W2p = jnp.zeros((Hp, Kp), f32).at[:H, :K].set(self.W2)
        self.b2p = jnp.zeros((1, Kp), f32).at[:, :K].set(self.b2)

        # 1/(M*T) pooling scale is folded into Wc; M is only known at call time,
        # so cache the scaled weight per pooled-length (computed once per M*T).
        self._wc_cache = {}

    def _combined_weight(self, MT):
        wc = self._wc_cache.get(MT)
        if wc is None:
            wc = self.Wc_unit * jnp.float32(1.0 / MT)
            self._wc_cache[MT] = wc
        return wc

    def __call__(self, x):
        # x: (N, M, T, J, C), float32
        N, M, T, J, C = x.shape
        # temporal re-sampling to clip_len frames (identical to the PyTorch code)
        # TODO(synk): np.linspace on concrete shapes only; breaks under jit with
        # dynamic T.
        if T >= self.clip_len:
            selected = np.linspace(0, T - 1, self.clip_len).astype(int)
        else:
            selected = np.array(list(range(T)) + [T - 1] * (self.clip_len - T))
        x = x[:, :, selected, :, :]
        N, M, T, J, C = x.shape
        MT, JC = M * T, J * C

        # pad batch to 8 sublanes and J*C to 128 lanes (zeros -> exact math)
        Np = _round_up(N, 8)
        x3 = x.reshape(N, MT, JC).astype(jnp.float32)
        x3p = jnp.zeros((Np, MT, self._JCp), jnp.float32).at[:N, :, :JC].set(x3)

        wc = self._combined_weight(MT)

        # single fused kernel: pooling + (backbone+fc1+BN folded) + ReLU + fc2
        out_pad = fused_forward(x3p, wc, self.bc, self.W2p, self.b2p)
        return out_pad[:N, :self.num_classes]


# ----------------------------------------------------------------------------
# Pure-JAX reference (original op order: backbone -> pool -> fc1 -> BN -> relu -> fc2)
# ----------------------------------------------------------------------------
def reference_forward(model, x):
    N, M, T, J, C = x.shape
    if T >= model.clip_len:
        selected = np.linspace(0, T - 1, model.clip_len).astype(int)
    else:
        selected = np.array(list(range(T)) + [T - 1] * (model.clip_len - T))
    x = x[:, :, selected, :, :]
    N, M, T, J, C = x.shape
    feat = x.reshape(N * M * T * J, C) @ model.Wb + model.bb      # backbone
    feat = feat.reshape(N, M, T, J, model.dim_rep)
    feat = jnp.transpose(feat, (0, 1, 3, 4, 2)).mean(axis=-1)     # mean over T
    feat = feat.reshape(N, M, -1).mean(axis=1)                    # mean over M
    h = feat @ model.W1 + model.b1
    h = (h - model.rmean) * jax.lax.rsqrt(model.rvar + BN_EPS) * model.gamma + model.beta
    h = jnp.maximum(h, 0.0)
    return h @ model.W2 + model.b2


if __name__ == "__main__":
    key = jax.random.PRNGKey(0)
    k_param, k_data = jax.random.split(key)

    # small shapes: N=2, M=2, T=16 input frames, J=17 joints, C=3 coords
    N, M, T, J, C = 2, 2, 16, 17, 3
    x = jax.random.normal(k_data, (N, M, T, J, C), jnp.float32)

    model = ActionNetPallas(k_param, dim_rep=32, num_classes=16,
                            hidden_dim=64, num_joints=J, clip_len=8, in_chans=C)

    out = model(x)
    out = jax.block_until_ready(out)

    ref = jax.block_until_ready(reference_forward(model, x))
    assert out.shape == (N, model.num_classes)
    np.testing.assert_allclose(np.asarray(out), np.asarray(ref), rtol=1e-4, atol=1e-5)

    print("KERNEL_OK")
</pallas_src>

<mosaic_0001>
module attributes {stable_mosaic.version = 11 : i64} {
  func.func @_fused_actionnet_kernel(%arg0: memref<8x16x128xf32, #tpu.memory_space<vmem>>, %arg1: memref<128x128xf32, #tpu.memory_space<vmem>>, %arg2: memref<1x128xf32, #tpu.memory_space<vmem>>, %arg3: memref<128x128xf32, #tpu.memory_space<vmem>>, %arg4: memref<1x128xf32, #tpu.memory_space<vmem>>, %arg5: memref<8x128xf32, #tpu.memory_space<vmem>>) attributes {dimension_semantics = [], scalar_prefetch = 0 : i64, scratch_operands = 0 : i64, tpu.core_type = #tpu.core_type<tc>} {
    %c0 = arith.constant 0 : index
    %c0_0 = arith.constant 0 : index
    %c0_1 = arith.constant 0 : index
    %0 = vector.load %arg0[%c0, %c0_0, %c0_1] : memref<8x16x128xf32, #tpu.memory_space<vmem>>, vector<8x16x128xf32>
    %cst = arith.constant dense<0.000000e+00> : vector<8x128xf32>
    %1 = vector.multi_reduction <add>, %0, %cst [1] : vector<8x16x128xf32> to vector<8x128xf32>
    %c0_2 = arith.constant 0 : index
    %c0_3 = arith.constant 0 : index
    %2 = vector.load %arg1[%c0_2, %c0_3] : memref<128x128xf32, #tpu.memory_space<vmem>>, vector<128x128xf32>
    %cst_4 = arith.constant dense<0.000000e+00> : vector<8x128xf32>
    %3 = tpu.matmul %1, %2, %cst_4 {dimension_numbers = #tpu.dot_dimension_numbers<[1], [0], [0], [1], [0, 0, 1, 1], [], []>} : vector<8x128xf32>, vector<128x128xf32>, vector<8x128xf32> -> vector<8x128xf32>
    %c0_5 = arith.constant 0 : index
    %c0_6 = arith.constant 0 : index
    %4 = vector.load %arg2[%c0_5, %c0_6] : memref<1x128xf32, #tpu.memory_space<vmem>>, vector<1x128xf32>
    %5 = vector.broadcast %4 : vector<1x128xf32> to vector<8x128xf32>
    %6 = arith.addf %3, %5 : vector<8x128xf32>
    %cst_7 = arith.constant 0.000000e+00 : f32
    %7 = vector.broadcast %cst_7 : f32 to vector<8x128xf32>
    %8 = arith.maximumf %6, %7 : vector<8x128xf32>
    %c0_8 = arith.constant 0 : index
    %c0_9 = arith.constant 0 : index
    %9 = vector.load %arg3[%c0_8, %c0_9] : memref<128x128xf32, #tpu.memory_space<vmem>>, vector<128x128xf32>
    %cst_10 = arith.constant dense<0.000000e+00> : vector<8x128xf32>
    %10 = tpu.matmul %8, %9, %cst_10 {dimension_numbers = #tpu.dot_dimension_numbers<[1], [0], [0], [1], [0, 0, 1, 1], [], []>} : vector<8x128xf32>, vector<128x128xf32>, vector<8x128xf32> -> vector<8x128xf32>
    %c0_11 = arith.constant 0 : index
    %c0_12 = arith.constant 0 : index
    %11 = vector.load %arg4[%c0_11, %c0_12] : memref<1x128xf32, #tpu.memory_space<vmem>>, vector<1x128xf32>
    %12 = vector.broadcast %11 : vector<1x128xf32> to vector<8x128xf32>
    %13 = arith.addf %10, %12 : vector<8x128xf32>
    %c0_13 = arith.constant 0 : index
    %c0_14 = arith.constant 0 : index
    %14 = vector.load %arg5[%c0_13, %c0_14] : memref<8x128xf32, #tpu.memory_space<vmem>>, vector<8x128xf32>
    tpu.vector_store %arg5[%c0_13, %c0_14], %13 {strides = array<i32>} : memref<8x128xf32, #tpu.memory_space<vmem>>, vector<8x128xf32>,
    return
  }
}

</mosaic_0001>

<llo_original>
// kernel: tpu_custom_call.1
$region0: #{tpu_custom_call.1}
  #allocation0 [shape = 'u32[]', space=smem, size = 0x4, offset = 0x4, fixed_abs, tag = 'smem constant byte address 0x4 - core index']
  #allocation1 [shape = 'u32[144,128]{1,0:T(1,128)}', space=vmem, size = 0x12000, scoped, tag = 'internal scratch']
  %s0 = inlined_call_operand.hbm [shape: f32[8,16,128], index: 0, kind: input, shape index: {}]
  %s1 = inlined_call_operand.hbm [shape: f32[128,128], index: 1, kind: input, shape index: {}]
  %s2 = inlined_call_operand.vmem [shape: f32[1,128], index: 2, kind: input, shape index: {}]
  %s3 = inlined_call_operand.hbm [shape: f32[128,128], index: 3, kind: input, shape index: {}]
  %s4 = inlined_call_operand.vmem [shape: f32[1,128], index: 4, kind: input, shape index: {}]
  %s5 = inlined_call_operand.hbm [shape: f32[8,128], index: 5, kind: output, shape index: {}]
  %s6 = sld [smem:[#allocation0]]
  $region42: #{tpu_custom_call.1} parent=0
    _
  %s8 = ssub.s32 1, %s6
  %s9 = scalar_select 0, %s8, %s6
  $region1: #{tpu_custom_call.1} parent=0
    #allocation2 [shape = 'u8[65536]{0}', space=vmem, size = 0x10000, scoped, tag = 'input window, operand 0, single buffered']
    #allocation3 [shape = 's32[1]{0}', space=sflag, size = 0x4, scoped, tag = 'scoped memory for tpu_custom_call.1']
    #allocation4 [shape = 's32[1]{0}', space=sflag, size = 0x4, scoped, tag = 'scoped memory for tpu_custom_call.1']
    #allocation5 [shape = 'u8[65536]{0}', space=vmem, size = 0x10000, scoped, tag = 'input window, operand 1, single buffered']
    #allocation6 [shape = 's32[1]{0}', space=sflag, size = 0x4, scoped, tag = 'scoped memory for tpu_custom_call.1']
    #allocation7 [shape = 'u8[65536]{0}', space=vmem, size = 0x10000, scoped, tag = 'input window, operand 3, single buffered']
    #allocation8 [shape = 'u8[4096]{0}', space=vmem, size = 0x1000, scoped, tag = 'output window, operand 0, single buffered']
    %10 = vsyncpa [#allocation3], 0
    %11 = vsyncpa [#allocation6], 0
    %12 = vsyncpa [#allocation4], 0
    // Predicated region
    $region2: #{tpu_custom_call.1} parent=1 // pred_check
      _
    $region3: #{tpu_custom_call.1} parent=1 // pred_check_branch
      %14 = sbr.rel (0) target = $region5
    $region4: #{tpu_custom_call.1} parent=1 // pred_region
      %s16 = ssub.s32 2048, 2048
      %17 = vsyncadd [#allocation3], %s16
      %s18 = sshll.u32 [#allocation2], 4
      %s19 = int_to_ptr.vmem [resolvable:$true] %s18
      %24 = dma.hbm_to_vmem [thread:$0]  %s0, 2048, %s19, [#allocation3], 128, 128, 8
    $region5: #{tpu_custom_call.1} parent=1 // pred_fallthru
      _
    // Predicated region
    $region6: #{tpu_custom_call.1} parent=1 // pred_check
      _
    $region7: #{tpu_custom_call.1} parent=1 // pred_check_branch
      %26 = sbr.rel (0) target = $region9
    $region8: #{tpu_custom_call.1} parent=1 // pred_region
      %s28 = ssub.s32 2048, 2048
      %29 = vsyncadd [#allocation6], %s28
      %s30 = sshll.u32 [#allocation5], 4
      %s31 = int_to_ptr.vmem [resolvable:$true] %s30
      %36 = dma.hbm_to_vmem [thread:$0]  %s1, 2048, %s31, [#allocation6], 128, 128, 8
    $region9: #{tpu_custom_call.1} parent=1 // pred_fallthru
      _
    // Predicated region
    $region10: #{tpu_custom_call.1} parent=1 // pred_check
      _
    $region11: #{tpu_custom_call.1} parent=1 // pred_check_branch
      %38 = sbr.rel (0) target = $region13
    $region12: #{tpu_custom_call.1} parent=1 // pred_region
      _
    $region13: #{tpu_custom_call.1} parent=1 // pred_fallthru
      _
    // Predicated region
    $region14: #{tpu_custom_call.1} parent=1 // pred_check
      _
    $region15: #{tpu_custom_call.1} parent=1 // pred_check_branch
      %40 = sbr.rel (0) target = $region17
    $region16: #{tpu_custom_call.1} parent=1 // pred_region
      %s42 = ssub.s32 2048, 2048
      %43 = vsyncadd [#allocation6], %s42
      %s44 = sshll.u32 [#allocation7], 4
      %s45 = int_to_ptr.vmem [resolvable:$true] %s44
      %50 = dma.hbm_to_vmem [thread:$0]  %s3, 2048, %s45, [#allocation6], 128, 128, 8
    $region17: #{tpu_custom_call.1} parent=1 // pred_fallthru
      _
    // Predicated region
    $region18: #{tpu_custom_call.1} parent=1 // pred_check
      _
    $region19: #{tpu_custom_call.1} parent=1 // pred_check_branch
      %52 = sbr.rel (0) target = $region21
    $region20: #{tpu_custom_call.1} parent=1 // pred_region
      _
    $region21: #{tpu_custom_call.1} parent=1 // pred_fallthru
      _
    // Predicated region
    $region22: #{tpu_custom_call.1} parent=1 // pred_check
      _
    $region23: #{tpu_custom_call.1} parent=1 // pred_check_branch
      %54 = sbr.rel (0) target = $region25
    $region24: #{tpu_custom_call.1} parent=1 // pred_region
      %55 = dma.done [#allocation3], 2048
    $region25: #{tpu_custom_call.1} parent=1 // pred_fallthru
      _
    // Predicated region
    $region26: #{tpu_custom_call.1} parent=1 // pred_check
      _
    $region27: #{tpu_custom_call.1} parent=1 // pred_check_branch
      %57 = sbr.rel (0) target = $region29
    $region28: #{tpu_custom_call.1} parent=1 // pred_region
      %58 = dma.done [#allocation6], 2048
    $region29: #{tpu_custom_call.1} parent=1 // pred_fallthru
      _
    // Predicated region
    $region30: #{tpu_custom_call.1} parent=1 // pred_check
      _
    $region31: #{tpu_custom_call.1} parent=1 // pred_check_branch
      %60 = sbr.rel (0) target = $region33
    $region32: #{tpu_custom_call.1} parent=1 // pred_region
      %61 = dma.done [#allocation6], 2048
    $region33: #{tpu_custom_call.1} parent=1 // pred_fallthru
      _
    %v62 = vld [vmem:[#allocation2] sm:$0xff]
    %v63 = vld [vmem:[#allocation2 + $0x8] sm:$0xff]
    %v64 = vld [vmem:[#allocation2 + $0x10] sm:$0xff]
    %v65 = vld [vmem:[#allocation2 + $0x18] sm:$0xff]
    %v66 = vld [vmem:[#allocation2 + $0x20] sm:$0xff]
    %v67 = vld [vmem:[#allocation2 + $0x28] sm:$0xff]
    %v68 = vld [vmem:[#allocation2 + $0x30] sm:$0xff]
    %v69 = vld [vmem:[#allocation2 + $0x38] sm:$0xff]
    %v70 = vld [vmem:[#allocation2 + $0x40] sm:$0xff]
    %v71 = vld [vmem:[#allocation2 + $0x48] sm:$0xff]
    %v72 = vld [vmem:[#allocation2 + $0x50] sm:$0xff]
    %v73 = vld [vmem:[#allocation2 + $0x58] sm:$0xff]
    %v74 = vld [vmem:[#allocation2 + $0x60] sm:$0xff]
    %v75 = vld [vmem:[#allocation2 + $0x68] sm:$0xff]
    %v76 = vld [vmem:[#allocation2 + $0x70] sm:$0xff]
    %v77 = vld [vmem:[#allocation2 + $0x78] sm:$0xff]
    %v78 = vadd.f32 %v62, %v63
    %v79 = vrot.slane %v78, 4
    %v80 = vadd.f32 %v78, %v79
    %v81 = vrot.slane %v80, 2
    %v82 = vadd.f32 %v80, %v81
    %v83 = vrot.slane %v82, 1
    %v84 = vadd.f32 %v82, %v83
    %v85 = vadd.f32 %v64, %v65
    %v86 = vrot.slane %v85, 4
    %v87 = vadd.f32 %v85, %v86
    %v88 = vrot.slane %v87, 2
    %v89 = vadd.f32 %v87, %v88
    %v90 = vrot.slane %v89, 1
    %v91 = vadd.f32 %v89, %v90
    %v92 = vadd.f32 %v66, %v67
    %v93 = vrot.slane %v92, 4
    %v94 = vadd.f32 %v92, %v93
    %v95 = vrot.slane %v94, 2
    %v96 = vadd.f32 %v94, %v95
    %v97 = vrot.slane %v96, 1
    %v98 = vadd.f32 %v96, %v97
    %v99 = vadd.f32 %v68, %v69
    %v100 = vrot.slane %v99, 4
    %v101 = vadd.f32 %v99, %v100
    %v102 = vrot.slane %v101, 2
    %v103 = vadd.f32 %v101, %v102
    %v104 = vrot.slane %v103, 1
    %v105 = vadd.f32 %v103, %v104
    %v106 = vadd.f32 %v70, %v71
    %v107 = vrot.slane %v106, 4
    %v108 = vadd.f32 %v106, %v107
    %v109 = vrot.slane %v108, 2
    %v110 = vadd.f32 %v108, %v109
    %v111 = vrot.slane %v110, 1
    %v112 = vadd.f32 %v110, %v111
    %v113 = vadd.f32 %v72, %v73
    %v114 = vrot.slane %v113, 4
    %v115 = vadd.f32 %v113, %v114
    %v116 = vrot.slane %v115, 2
    %v117 = vadd.f32 %v115, %v116
    %v118 = vrot.slane %v117, 1
    %v119 = vadd.f32 %v117, %v118
    %v120 = vadd.f32 %v74, %v75
    %v121 = vrot.slane %v120, 4
    %v122 = vadd.f32 %v120, %v121
    %v123 = vrot.slane %v122, 2
    %v124 = vadd.f32 %v122, %v123
    %v125 = vrot.slane %v124, 1
    %v126 = vadd.f32 %v124, %v125
    %v127 = vadd.f32 %v76, %v77
    %v128 = vrot.slane %v127, 4
    %v129 = vadd.f32 %v127, %v128
    %v130 = vrot.slane %v129, 2
    %v131 = vadd.f32 %v129, %v130
    %v132 = vrot.slane %v131, 1
    %v133 = vadd.f32 %v131, %v132
    %v134 = vld [vmem:[#allocation5] sm:$0xff]
    %v135 = vld [vmem:[#allocation5 + $0x8] sm:$0xff]
    %v136 = vld [vmem:[#allocation5 + $0x10] sm:$0xff]
    %v137 = vld [vmem:[#allocation5 + $0x18] sm:$0xff]
    %v138 = vld [vmem:[#allocation5 + $0x20] sm:$0xff]
    %v139 = vld [vmem:[#allocation5 + $0x28] sm:$0xff]
    %v140 = vld [vmem:[#allocation5 + $0x30] sm:$0xff]
    %v141 = vld [vmem:[#allocation5 + $0x38] sm:$0xff]
    %v142 = vld [vmem:[#allocation5 + $0x40] sm:$0xff]
    %v143 = vld [vmem:[#allocation5 + $0x48] sm:$0xff]
    %v144 = vld [vmem:[#allocation5 + $0x50] sm:$0xff]
    %v145 = vld [vmem:[#allocation5 + $0x58] sm:$0xff]
    %v146 = vld [vmem:[#allocation5 + $0x60] sm:$0xff]
    %v147 = vld [vmem:[#allocation5 + $0x68] sm:$0xff]
    %v148 = vld [vmem:[#allocation5 + $0x70] sm:$0xff]
    %v149 = vld [vmem:[#allocation5 + $0x78] sm:$0xff]
    %v150 = vld [vmem:[%s2] sm:$0x1]
    %v152 = vlaneseq
    %v153 = vshrl.u32 %v152, 7
    %v154 = vsub.s32 0, %v153
    %v155 = vrot.slane %v150, %v154
    %vm165 = vcmask 1041409
    %v166 = vsel %vm165, %v91, %v84
    %vm167 = vcmask 1042434
    %v168 = vsel %vm167, %v98, %v166
    %vm169 = vcmask 1043459
    %v170 = vsel %vm169, %v105, %v168
    %vm171 = vcmask 1044484
    %v172 = vsel %vm171, %v112, %v170
    %vm173 = vcmask 1045509
    %v174 = vsel %vm173, %v119, %v172
    %vm175 = vcmask 1046534
    %v176 = vsel %vm175, %v126, %v174
    %vm177 = vcmask 1047559
    %v178 = vsel %vm177, %v133, %v176
    %180 = vmatprep.subr.mxu0 0.0
    %181 = vmatpush1.msra.mxu0 %v149
    %182 = vmatprep.subr.mxu0 0.0
    %183 = vmatpush1.msra.mxu0 %v148
    %184 = vmatprep.subr.mxu0 0.0
    %185 = vmatpush1.msra.mxu0 %v147
    %186 = vmatprep.subr.mxu0 0.0
    %187 = vmatpush1.msra.mxu0 %v146
    %188 = vmatprep.subr.mxu0 0.0
    %189 = vmatpush1.msra.mxu0 %v145
    %190 = vmatprep.subr.mxu0 0.0
    %191 = vmatpush1.msra.mxu0 %v144
    %192 = vmatprep.subr.mxu0 0.0
    %193 = vmatpush1.msra.mxu0 %v143
    %194 = vmatprep.subr.mxu0 0.0
    %195 = vmatpush1.msra.mxu0 %v142
    %196 = vmatprep.subr.mxu0 0.0
    %197 = vmatpush1.msra.mxu0 %v141
    %198 = vmatprep.subr.mxu0 0.0
    %199 = vmatpush1.msra.mxu0 %v140
    %200 = vmatprep.subr.mxu0 0.0
    %201 = vmatpush1.msra.mxu0 %v139
    %202 = vmatprep.subr.mxu0 0.0
    %203 = vmatpush1.msra.mxu0 %v138
    %204 = vmatprep.subr.mxu0 0.0
    %205 = vmatpush1.msra.mxu0 %v137
    %206 = vmatprep.subr.mxu0 0.0
    %207 = vmatpush1.msra.mxu0 %v136
    %208 = vmatprep.subr.mxu0 0.0
    %209 = vmatpush1.msra.mxu0 %v135
    %210 = vmatprep.subr.mxu0 0.0
    %211 = vmatpush1.msra.mxu0 %v134
    %212 = vmatprep.subr.mxu0 0.0
    %213 = vmatpush2.msra.mxu0 0.0
    %214 = vmatprep.subr.mxu0 0.0
    %215 = vmatpush2.msra.mxu0 0.0
    %216 = vmatprep.subr.mxu0 0.0
    %217 = vmatpush2.msra.mxu0 0.0
    %218 = vmatprep.subr.mxu0 0.0
    %219 = vmatpush2.msra.mxu0 0.0
    %220 = vmatprep.subr.mxu0 0.0
    %221 = vmatpush2.msra.mxu0 0.0
    %222 = vmatprep.subr.mxu0 0.0
    %223 = vmatpush2.msra.mxu0 0.0
    %224 = vmatprep.subr.mxu0 0.0
    %225 = vmatpush2.msra.mxu0 0.0
    %226 = vmatprep.subr.mxu0 0.0
    %227 = vmatpush2.msra.mxu0 0.0
    %228 = vmatprep.subr.mxu0 0.0
    %229 = vmatpush2.msra.mxu0 0.0
    %230 = vmatprep.subr.mxu0 0.0
    %231 = vmatpush2.msra.mxu0 0.0
    %232 = vmatprep.subr.mxu0 0.0
    %233 = vmatpush2.msra.mxu0 0.0
    %234 = vmatprep.subr.mxu0 0.0
    %235 = vmatpush2.msra.mxu0 0.0
    %236 = vmatprep.subr.mxu0 0.0
    %237 = vmatpush2.msra.mxu0 0.0
    %238 = vmatprep.subr.mxu0 0.0
    %239 = vmatpush2.msra.mxu0 0.0
    %240 = vmatprep.subr.mxu0 0.0
    %241 = vmatpush2.msra.mxu0 0.0
    %242 = vmatprep.subr.mxu0 0.0
    %243 = vmatpush2.msra.mxu0 0.0
    %244 = vmatprep.mubr.f32.mxu0 0.0
    %245 = vmatmul.mubr.f32.gmra.mxu0 %v178
    %v246 = vpop.f32.mrf.mxu0
    %v247 = vadd.f32 %v155, %v246
    %v248 = vpop.f32.mrf.mxu0
    %249 = vdwg.mxu0
    %v250 = vmax.f32 %v247, 0.0
    %v251 = vld [vmem:[#allocation7] sm:$0xff]
    %v252 = vld [vmem:[#allocation7 + $0x8] sm:$0xff]
    %v253 = vld [vmem:[#allocation7 + $0x10] sm:$0xff]
    %v254 = vld [vmem:[#allocation7 + $0x18] sm:$0xff]
    %v255 = vld [vmem:[#allocation7 + $0x20] sm:$0xff]
    %v256 = vld [vmem:[#allocation7 + $0x28] sm:$0xff]
    %v257 = vld [vmem:[#allocation7 + $0x30] sm:$0xff]
    %v258 = vld [vmem:[#allocation7 + $0x38] sm:$0xff]
    %v259 = vld [vmem:[#allocation7 + $0x40] sm:$0xff]
    %v260 = vld [vmem:[#allocation7 + $0x48] sm:$0xff]
    %v261 = vld [vmem:[#allocation7 + $0x50] sm:$0xff]
    %v262 = vld [vmem:[#allocation7 + $0x58] sm:$0xff]
    %v263 = vld [vmem:[#allocation7 + $0x60] sm:$0xff]
    %v264 = vld [vmem:[#allocation7 + $0x68] sm:$0xff]
    %v265 = vld [vmem:[#allocation7 + $0x70] sm:$0xff]
    %v266 = vld [vmem:[#allocation7 + $0x78] sm:$0xff]
    %v267 = vld [vmem:[%s4] sm:$0x1]
    %v269 = vlaneseq
    %v270 = vshrl.u32 %v269, 7
    %v271 = vsub.s32 0, %v270
    %v272 = vrot.slane %v267, %v271
    %274 = vmatprep.subr.mxu0 0.0
    %275 = vmatpush1.msra.mxu0 %v266
    %276 = vmatprep.subr.mxu0 0.0
    %277 = vmatpush1.msra.mxu0 %v265
    %278 = vmatprep.subr.mxu0 0.0
    %279 = vmatpush1.msra.mxu0 %v264
    %280 = vmatprep.subr.mxu0 0.0
    %281 = vmatpush1.msra.mxu0 %v263
    %282 = vmatprep.subr.mxu0 0.0
    %283 = vmatpush1.msra.mxu0 %v262
    %284 = vmatprep.subr.mxu0 0.0
    %285 = vmatpush1.msra.mxu0 %v261
    %286 = vmatprep.subr.mxu0 0.0
    %287 = vmatpush1.msra.mxu0 %v260
    %288 = vmatprep.subr.mxu0 0.0
    %289 = vmatpush1.msra.mxu0 %v259
    %290 = vmatprep.subr.mxu0 0.0
    %291 = vmatpush1.msra.mxu0 %v258
    %292 = vmatprep.subr.mxu0 0.0
    %293 = vmatpush1.msra.mxu0 %v257
    %294 = vmatprep.subr.mxu0 0.0
    %295 = vmatpush1.msra.mxu0 %v256
    %296 = vmatprep.subr.mxu0 0.0
    %297 = vmatpush1.msra.mxu0 %v255
    %298 = vmatprep.subr.mxu0 0.0
    %299 = vmatpush1.msra.mxu0 %v254
    %300 = vmatprep.subr.mxu0 0.0
    %301 = vmatpush1.msra.mxu0 %v253
    %302 = vmatprep.subr.mxu0 0.0
    %303 = vmatpush1.msra.mxu0 %v252
    %304 = vmatprep.subr.mxu0 0.0
    %305 = vmatpush1.msra.mxu0 %v251
    %306 = vmatprep.subr.mxu0 0.0
    %307 = vmatpush2.msra.mxu0 0.0
    %308 = vmatprep.subr.mxu0 0.0
    %309 = vmatpush2.msra.mxu0 0.0
    %310 = vmatprep.subr.mxu0 0.0
    %311 = vmatpush2.msra.mxu0 0.0
    %312 = vmatprep.subr.mxu0 0.0
    %313 = vmatpush2.msra.mxu0 0.0
    %314 = vmatprep.subr.mxu0 0.0
    %315 = vmatpush2.msra.mxu0 0.0
    %316 = vmatprep.subr.mxu0 0.0
    %317 = vmatpush2.msra.mxu0 0.0
    %318 = vmatprep.subr.mxu0 0.0
    %319 = vmatpush2.msra.mxu0 0.0
    %320 = vmatprep.subr.mxu0 0.0
    %321 = vmatpush2.msra.mxu0 0.0
    %322 = vmatprep.subr.mxu0 0.0
    %323 = vmatpush2.msra.mxu0 0.0
    %324 = vmatprep.subr.mxu0 0.0
    %325 = vmatpush2.msra.mxu0 0.0
    %326 = vmatprep.subr.mxu0 0.0
    %327 = vmatpush2.msra.mxu0 0.0
    %328 = vmatprep.subr.mxu0 0.0
    %329 = vmatpush2.msra.mxu0 0.0
    %330 = vmatprep.subr.mxu0 0.0
    %331 = vmatpush2.msra.mxu0 0.0
    %332 = vmatprep.subr.mxu0 0.0
    %333 = vmatpush2.msra.mxu0 0.0
    %334 = vmatprep.subr.mxu0 0.0
    %335 = vmatpush2.msra.mxu0 0.0
    %336 = vmatprep.subr.mxu0 0.0
    %337 = vmatpush2.msra.mxu0 0.0
    %338 = vmatprep.mubr.f32.mxu0 0.0
    %339 = vmatmul.mubr.f32.gmra.mxu0 %v250
    %v340 = vpop.f32.mrf.mxu0
    %v341 = vadd.f32 %v272, %v340
    %v342 = vpop.f32.mrf.mxu0
    %343 = vdwg.mxu0
    %344 = vst [vmem:[#allocation8] sm:$0xff] %v341
    // Predicated region
    $region34: #{tpu_custom_call.1} parent=1 // pred_check
      _
    $region35: #{tpu_custom_call.1} parent=1 // pred_check_branch
      %346 = sbr.rel (0) target = $region37
    $region36: #{tpu_custom_call.1} parent=1 // pred_region
      %s348 = ssub.s32 128, 128
      %349 = vsyncadd [#allocation4], %s348
      %s351 = sshll.u32 [#allocation8], 4
      %s352 = int_to_ptr.vmem [resolvable:$true] %s351
      %354 = dma.vmem_to_hbm [thread:$0]  %s352, 128, %s5, [#allocation4]
    $region37: #{tpu_custom_call.1} parent=1 // pred_fallthru
      _
    // Predicated region
    $region38: #{tpu_custom_call.1} parent=1 // pred_check
      _
    $region39: #{tpu_custom_call.1} parent=1 // pred_check_branch
      %356 = sbr.rel (0) target = $region41
    $region40: #{tpu_custom_call.1} parent=1 // pred_region
      %357 = dma.done [#allocation4], 128
    $region41: #{tpu_custom_call.1} parent=1 // pred_fallthru
      _
    %358 = vsyncpa [#allocation3], 1
    %359 = vsyncpa [#allocation6], 1
    %360 = vsyncpa [#allocation4], 1

</llo_original>
